<compile_context>
chip_gen: v5e
topology: v5e:2x2
jax: 0.10.0
libtpu: 0.0.40
codegen_flags: <defaults>
</compile_context>

<pallas_src>
import functools

import jax
import jax.numpy as jnp
from jax.experimental import pallas as pl
from jax.experimental.pallas import tpu as pltpu


def _round_up(x, m):
    return ((x + m - 1) // m) * m


def _fused_pgraph_conv_kernel(a_ref, x_ref, w_ref, b_ref, o_ref, *, num_layers, fp):
    """All GraphConv layers fused into one kernel body; everything VMEM-resident.

    a_ref: (N, N)          dense adjacency, A[dst, src]
    x_ref: (N, Fp)         node features, zero-padded to Fp (=128) lanes
    w_ref: (L, Fp, 2*Fp)   per-layer [Wrel | Wroot] side by side, zero-padded
    b_ref: (L, 1, Fp)      per-layer bias, zero-padded
    o_ref: (N, Fp)         output; lanes >= n_classes are exactly tanh(0) = 0
    """
    a = a_ref[...]
    h = x_ref[...]
    # Static (unrolled) loop over layers; A / weights / activation never leave VMEM.
    for layer in range(num_layers):
        # T = H @ [Wrel | Wroot]  -> lanes [0,Fp) = H@Wrel, lanes [Fp,2Fp) = H@Wroot
        t = jnp.dot(h, w_ref[layer], preferred_element_type=jnp.float32)    # (N, 2*Fp)
        # (A @ H) @ Wrel  ==  A @ (H @ Wrel)   (reassociated; no lane concat needed)
        out = jnp.dot(a, t[:, :fp], preferred_element_type=jnp.float32)
        out = out + t[:, fp:] + b_ref[layer]                                # (1,Fp) bcast
        if layer < num_layers - 1:
            h = jnp.maximum(out, 0.0)   # ReLU on input/hidden layers
        else:
            h = jnp.tanh(out)           # tanh on the output layer
    o_ref[...] = h.astype(o_ref.dtype)


def init_graph_conv_params(key, in_dim, out_dim):
    """Deterministic glorot-ish init for one GraphConv layer."""
    k1, k2, k3 = jax.random.split(key, 3)
    scale = 1.0 / jnp.sqrt(jnp.float32(in_dim))
    wrel = jax.random.uniform(k1, (in_dim, out_dim), jnp.float32, -scale, scale)
    wroot = jax.random.uniform(k2, (in_dim, out_dim), jnp.float32, -scale, scale)
    b = jax.random.uniform(k3, (out_dim,), jnp.float32, -scale, scale)
    return wrel, wroot, b


def pack_pgraph_conv_params(params, num_features):
    """One-time packing of all layer weights into the kernel's padded layout.

    Called at parameter-init time, NOT per forward call (hoists ~10 XLA pad/stack
    ops and ~0.5 MiB of re-materialized weights out of the forward path).
    Returns (w_stack, b_stack, fp, n_classes).
    """
    in_p, hidden_ps, out_p = params
    layers = [in_p] + list(hidden_ps) + [out_p]
    n_classes = out_p[0].shape[1]
    all_dims = [num_features] + [p[0].shape[1] for p in layers]
    fp = _round_up(max(all_dims), 128)       # common lane-dense feature width

    w_list, b_list = [], []
    for wrel, wroot, b in layers:
        fin, fout = wrel.shape
        w = jnp.zeros((fp, 2 * fp), jnp.float32)
        w = w.at[:fin, :fout].set(wrel)             # lanes [0, Fp): Wrel (aggregated part)
        w = w.at[:fin, fp:fp + fout].set(wroot)     # lanes [Fp, 2Fp): Wroot (self part)
        w_list.append(w)
        b_list.append(jnp.zeros((1, fp), jnp.float32).at[0, :fout].set(b))
    w_stack = jnp.stack(w_list)   # (L, Fp, 2*Fp)
    b_stack = jnp.stack(b_list)   # (L, 1, Fp)
    return w_stack, b_stack, fp, n_classes


@functools.partial(jax.jit, static_argnames=("fp", "n_classes"))
def pgraph_conv_forward(x, a, w_stack, b_stack, *, fp, n_classes):
    """Full PGraphConv forward as a single fused Pallas kernel.

    x: (N, F) node features, a: (N, N) dense adjacency,
    w_stack / b_stack / fp / n_classes: from pack_pgraph_conv_params (precomputed).
    """
    n, f = x.shape
    num_layers = w_stack.shape[0]

    # Only per-call prep: zero-pad node features to lane-dense (N, Fp).
    xp = jnp.pad(x.astype(jnp.float32), ((0, 0), (0, fp - f)))

    kernel = functools.partial(_fused_pgraph_conv_kernel,
                               num_layers=num_layers, fp=fp)
    vmem_spec = pl.BlockSpec(memory_space=pltpu.MemorySpace.VMEM)
    out_padded = pl.pallas_call(
        kernel,
        out_shape=jax.ShapeDtypeStruct((n, fp), jnp.float32),
        in_specs=[vmem_spec, vmem_spec, vmem_spec, vmem_spec],
        out_specs=vmem_spec,
    )(a, xp, w_stack, b_stack)

    # Lane-dense in-kernel store; the narrow n_classes slice happens here (free-ish).
    return out_padded[:, :n_classes]


def _reference_forward(x, a, params):
    """Plain-JAX reference for correctness checking."""
    def layer(h, p, act):
        wrel, wroot, b = p
        o = (a @ h) @ wrel + h @ wroot + b[None, :]
        if act == "relu":
            o = jnp.maximum(o, 0.0)
        elif act == "tanh":
            o = jnp.tanh(o)
        return o
    in_p, hidden_ps, out_p = params
    h = layer(x, in_p, "relu")
    for p in hidden_ps:
        h = layer(h, p, "relu")
    return layer(h, out_p, "tanh")


if __name__ == "__main__":
    key = jax.random.PRNGKey(0)

    num_nodes = 32
    num_features = 16
    num_hidden = 32
    n_classes = 8
    num_hidden_layers = 2

    k_x, k_e, k_in, k_h, k_out = jax.random.split(key, 5)

    # Node features.
    x = jax.random.normal(k_x, (num_nodes, num_features), jnp.float32)

    # Deterministic small graph: a ring plus a few random edges -> dense A.
    src_ring = jnp.arange(num_nodes, dtype=jnp.int32)
    dst_ring = (src_ring + 1) % num_nodes
    extra_src = jax.random.randint(k_e, (16,), 0, num_nodes, jnp.int32)
    extra_dst = jax.random.randint(jax.random.fold_in(k_e, 1), (16,), 0,
                                   num_nodes, jnp.int32)
    src = jnp.concatenate([src_ring, extra_src])
    dst = jnp.concatenate([dst_ring, extra_dst])
    a = jnp.zeros((num_nodes, num_nodes), jnp.float32).at[dst, src].add(1.0)

    # Parameters (deterministic), then one-time packing into the kernel layout.
    in_params = init_graph_conv_params(k_in, num_features, num_hidden)
    hidden_params = [
        init_graph_conv_params(jax.random.fold_in(k_h, i), num_hidden,
                               num_hidden)
        for i in range(num_hidden_layers)
    ]
    out_params = init_graph_conv_params(k_out, num_hidden, n_classes)
    params = (in_params, hidden_params, out_params)

    w_stack, b_stack, fp, ncls = pack_pgraph_conv_params(params, num_features)
    w_stack = jax.block_until_ready(w_stack)   # packing cost paid here, once

    out = pgraph_conv_forward(x, a, w_stack, b_stack, fp=fp, n_classes=ncls)
    out = jax.block_until_ready(out)

    ref = _reference_forward(x, a, params)
    assert out.shape == (num_nodes, n_classes)
    # ULP-level agreement (reassociated f32 sums), not bitwise.
    assert jnp.allclose(out, ref, atol=5e-5, rtol=5e-5)

    print("KERNEL_OK")
</pallas_src>

<mosaic_0001>
module attributes {stable_mosaic.version = 11 : i64} {
  func.func @_fused_pgraph_conv_kernel(%arg0: memref<32x32xf32, #tpu.memory_space<vmem>>, %arg1: memref<32x128xf32, #tpu.memory_space<vmem>>, %arg2: memref<4x128x256xf32, #tpu.memory_space<vmem>>, %arg3: memref<4x1x128xf32, #tpu.memory_space<vmem>>, %arg4: memref<32x128xf32, #tpu.memory_space<vmem>>) attributes {dimension_semantics = [], scalar_prefetch = 0 : i64, scratch_operands = 0 : i64, tpu.core_type = #tpu.core_type<tc>} {
    %c0 = arith.constant 0 : index
    %c0_0 = arith.constant 0 : index
    %0 = vector.load %arg0[%c0, %c0_0] : memref<32x32xf32, #tpu.memory_space<vmem>>, vector<32x32xf32>
    %c0_1 = arith.constant 0 : index
    %c0_2 = arith.constant 0 : index
    %1 = vector.load %arg1[%c0_1, %c0_2] : memref<32x128xf32, #tpu.memory_space<vmem>>, vector<32x128xf32>
    %c0_3 = arith.constant 0 : index
    %c0_4 = arith.constant 0 : index
    %c0_5 = arith.constant 0 : index
    %2 = vector.load %arg2[%c0_3, %c0_4, %c0_5] : memref<4x128x256xf32, #tpu.memory_space<vmem>>, vector<1x128x256xf32>
    %3 = vector.shape_cast %2 : vector<1x128x256xf32> to vector<128x256xf32>
    %cst = arith.constant dense<0.000000e+00> : vector<32x256xf32>
    %4 = tpu.matmul %1, %3, %cst {dimension_numbers = #tpu.dot_dimension_numbers<[1], [0], [0], [1], [0, 0, 1, 1], [], []>} : vector<32x128xf32>, vector<128x256xf32>, vector<32x256xf32> -> vector<32x256xf32>
    %5 = vector.extract_strided_slice %4 {offsets = [0, 0], sizes = [32, 128], strides = [1, 1]} : vector<32x256xf32> to vector<32x128xf32>
    %cst_6 = arith.constant dense<0.000000e+00> : vector<32x128xf32>
    %6 = tpu.matmul %0, %5, %cst_6 {dimension_numbers = #tpu.dot_dimension_numbers<[1], [0], [0], [1], [0, 0, 1, 1], [], []>} : vector<32x32xf32>, vector<32x128xf32>, vector<32x128xf32> -> vector<32x128xf32>
    %7 = vector.extract_strided_slice %4 {offsets = [0, 128], sizes = [32, 128], strides = [1, 1]} : vector<32x256xf32> to vector<32x128xf32>
    %8 = arith.addf %6, %7 : vector<32x128xf32>
    %c0_7 = arith.constant 0 : index
    %c0_8 = arith.constant 0 : index
    %c0_9 = arith.constant 0 : index
    %9 = vector.load %arg3[%c0_7, %c0_8, %c0_9] : memref<4x1x128xf32, #tpu.memory_space<vmem>>, vector<1x1x128xf32>
    %10 = vector.shape_cast %9 : vector<1x1x128xf32> to vector<1x128xf32>
    %11 = vector.broadcast %10 : vector<1x128xf32> to vector<32x128xf32>
    %12 = arith.addf %8, %11 : vector<32x128xf32>
    %cst_10 = arith.constant 0.000000e+00 : f32
    %13 = vector.broadcast %cst_10 : f32 to vector<32x128xf32>
    %14 = arith.maximumf %12, %13 : vector<32x128xf32>
    %c1 = arith.constant 1 : index
    %c0_11 = arith.constant 0 : index
    %c0_12 = arith.constant 0 : index
    %15 = vector.load %arg2[%c1, %c0_11, %c0_12] : memref<4x128x256xf32, #tpu.memory_space<vmem>>, vector<1x128x256xf32>
    %16 = vector.shape_cast %15 : vector<1x128x256xf32> to vector<128x256xf32>
    %cst_13 = arith.constant dense<0.000000e+00> : vector<32x256xf32>
    %17 = tpu.matmul %14, %16, %cst_13 {dimension_numbers = #tpu.dot_dimension_numbers<[1], [0], [0], [1], [0, 0, 1, 1], [], []>} : vector<32x128xf32>, vector<128x256xf32>, vector<32x256xf32> -> vector<32x256xf32>
    %18 = vector.extract_strided_slice %17 {offsets = [0, 0], sizes = [32, 128], strides = [1, 1]} : vector<32x256xf32> to vector<32x128xf32>
    %cst_14 = arith.constant dense<0.000000e+00> : vector<32x128xf32>
    %19 = tpu.matmul %0, %18, %cst_14 {dimension_numbers = #tpu.dot_dimension_numbers<[1], [0], [0], [1], [0, 0, 1, 1], [], []>} : vector<32x32xf32>, vector<32x128xf32>, vector<32x128xf32> -> vector<32x128xf32>
    %20 = vector.extract_strided_slice %17 {offsets = [0, 128], sizes = [32, 128], strides = [1, 1]} : vector<32x256xf32> to vector<32x128xf32>
    %21 = arith.addf %19, %20 : vector<32x128xf32>
    %c1_15 = arith.constant 1 : index
    %c0_16 = arith.constant 0 : index
    %c0_17 = arith.constant 0 : index
    %22 = vector.load %arg3[%c1_15, %c0_16, %c0_17] : memref<4x1x128xf32, #tpu.memory_space<vmem>>, vector<1x1x128xf32>
    %23 = vector.shape_cast %22 : vector<1x1x128xf32> to vector<1x128xf32>
    %24 = vector.broadcast %23 : vector<1x128xf32> to vector<32x128xf32>
    %25 = arith.addf %21, %24 : vector<32x128xf32>
    %cst_18 = arith.constant 0.000000e+00 : f32
    %26 = vector.broadcast %cst_18 : f32 to vector<32x128xf32>
    %27 = arith.maximumf %25, %26 : vector<32x128xf32>
    %c2 = arith.constant 2 : index
    %c0_19 = arith.constant 0 : index
    %c0_20 = arith.constant 0 : index
    %28 = vector.load %arg2[%c2, %c0_19, %c0_20] : memref<4x128x256xf32, #tpu.memory_space<vmem>>, vector<1x128x256xf32>
    %29 = vector.shape_cast %28 : vector<1x128x256xf32> to vector<128x256xf32>
    %cst_21 = arith.constant dense<0.000000e+00> : vector<32x256xf32>
    %30 = tpu.matmul %27, %29, %cst_21 {dimension_numbers = #tpu.dot_dimension_numbers<[1], [0], [0], [1], [0, 0, 1, 1], [], []>} : vector<32x128xf32>, vector<128x256xf32>, vector<32x256xf32> -> vector<32x256xf32>
    %31 = vector.extract_strided_slice %30 {offsets = [0, 0], sizes = [32, 128], strides = [1, 1]} : vector<32x256xf32> to vector<32x128xf32>
    %cst_22 = arith.constant dense<0.000000e+00> : vector<32x128xf32>
    %32 = tpu.matmul %0, %31, %cst_22 {dimension_numbers = #tpu.dot_dimension_numbers<[1], [0], [0], [1], [0, 0, 1, 1], [], []>} : vector<32x32xf32>, vector<32x128xf32>, vector<32x128xf32> -> vector<32x128xf32>
    %33 = vector.extract_strided_slice %30 {offsets = [0, 128], sizes = [32, 128], strides = [1, 1]} : vector<32x256xf32> to vector<32x128xf32>
    %34 = arith.addf %32, %33 : vector<32x128xf32>
    %c2_23 = arith.constant 2 : index
    %c0_24 = arith.constant 0 : index
    %c0_25 = arith.constant 0 : index
    %35 = vector.load %arg3[%c2_23, %c0_24, %c0_25] : memref<4x1x128xf32, #tpu.memory_space<vmem>>, vector<1x1x128xf32>
    %36 = vector.shape_cast %35 : vector<1x1x128xf32> to vector<1x128xf32>
    %37 = vector.broadcast %36 : vector<1x128xf32> to vector<32x128xf32>
    %38 = arith.addf %34, %37 : vector<32x128xf32>
    %cst_26 = arith.constant 0.000000e+00 : f32
    %39 = vector.broadcast %cst_26 : f32 to vector<32x128xf32>
    %40 = arith.maximumf %38, %39 : vector<32x128xf32>
    %c3 = arith.constant 3 : index
    %c0_27 = arith.constant 0 : index
    %c0_28 = arith.constant 0 : index
    %41 = vector.load %arg2[%c3, %c0_27, %c0_28] : memref<4x128x256xf32, #tpu.memory_space<vmem>>, vector<1x128x256xf32>
    %42 = vector.shape_cast %41 : vector<1x128x256xf32> to vector<128x256xf32>
    %cst_29 = arith.constant dense<0.000000e+00> : vector<32x256xf32>
    %43 = tpu.matmul %40, %42, %cst_29 {dimension_numbers = #tpu.dot_dimension_numbers<[1], [0], [0], [1], [0, 0, 1, 1], [], []>} : vector<32x128xf32>, vector<128x256xf32>, vector<32x256xf32> -> vector<32x256xf32>
    %44 = vector.extract_strided_slice %43 {offsets = [0, 0], sizes = [32, 128], strides = [1, 1]} : vector<32x256xf32> to vector<32x128xf32>
    %cst_30 = arith.constant dense<0.000000e+00> : vector<32x128xf32>
    %45 = tpu.matmul %0, %44, %cst_30 {dimension_numbers = #tpu.dot_dimension_numbers<[1], [0], [0], [1], [0, 0, 1, 1], [], []>} : vector<32x32xf32>, vector<32x128xf32>, vector<32x128xf32> -> vector<32x128xf32>
    %46 = vector.extract_strided_slice %43 {offsets = [0, 128], sizes = [32, 128], strides = [1, 1]} : vector<32x256xf32> to vector<32x128xf32>
    %47 = arith.addf %45, %46 : vector<32x128xf32>
    %c3_31 = arith.constant 3 : index
    %c0_32 = arith.constant 0 : index
    %c0_33 = arith.constant 0 : index
    %48 = vector.load %arg3[%c3_31, %c0_32, %c0_33] : memref<4x1x128xf32, #tpu.memory_space<vmem>>, vector<1x1x128xf32>
    %49 = vector.shape_cast %48 : vector<1x1x128xf32> to vector<1x128xf32>
    %50 = vector.broadcast %49 : vector<1x128xf32> to vector<32x128xf32>
    %51 = arith.addf %47, %50 : vector<32x128xf32>
    %52 = math.tanh %51 : vector<32x128xf32>
    %c0_34 = arith.constant 0 : index
    %c0_35 = arith.constant 0 : index
    %53 = vector.load %arg4[%c0_34, %c0_35] : memref<32x128xf32, #tpu.memory_space<vmem>>, vector<32x128xf32>
    tpu.vector_store %arg4[%c0_34, %c0_35], %52 {strides = array<i32>} : memref<32x128xf32, #tpu.memory_space<vmem>>, vector<32x128xf32>,
    return
  }
}

</mosaic_0001>

<llo_original>
// kernel: pgraph_conv_forward.1
$region0: #{pgraph_conv_forward.1}
  #allocation0 [shape = 'u32[]', space=smem, size = 0x4, offset = 0x4, fixed_abs, tag = 'smem constant byte address 0x4 - core index']
  #allocation1 [shape = 'u32[72,128]{1,0:T(1,128)}', space=vmem, size = 0x9000, scoped, tag = 'internal scratch']
  %s0 = inlined_call_operand.vmem [shape: f32[32,32], index: 0, kind: input, shape index: {}]
  %s1 = inlined_call_operand.vmem [shape: f32[32,128], index: 1, kind: input, shape index: {}]
  %s2 = inlined_call_operand.hbm [shape: f32[4,128,256], index: 2, kind: input, shape index: {}]
  %s3 = inlined_call_operand.vmem [shape: f32[4,1,128], index: 3, kind: input, shape index: {}]
  %s4 = inlined_call_operand.vmem [shape: f32[32,128], index: 4, kind: output, shape index: {}]
  %s5 = sld [smem:[#allocation0]]
  $region30: #{pgraph_conv_forward.1} parent=0
    _
  %s7 = ssub.s32 1, %s5
  %s8 = scalar_select 0, %s7, %s5
  $region1: #{pgraph_conv_forward.1} parent=0
    #allocation2 [shape = 'u8[524288]{0}', space=vmem, size = 0x80000, scoped, tag = 'input window, operand 2, single buffered']
    #allocation3 [shape = 's32[1]{0}', space=sflag, size = 0x4, scoped, tag = 'scoped memory for pgraph_conv_forward.1']
    %9 = vsyncpa [#allocation3], 0
    // Predicated region
    $region2: #{pgraph_conv_forward.1} parent=1 // pred_check
      _
    $region3: #{pgraph_conv_forward.1} parent=1 // pred_check_branch
      %11 = sbr.rel (0) target = $region5
    $region4: #{pgraph_conv_forward.1} parent=1 // pred_region
      _
    $region5: #{pgraph_conv_forward.1} parent=1 // pred_fallthru
      _
    // Predicated region
    $region6: #{pgraph_conv_forward.1} parent=1 // pred_check
      _
    $region7: #{pgraph_conv_forward.1} parent=1 // pred_check_branch
      %13 = sbr.rel (0) target = $region9
    $region8: #{pgraph_conv_forward.1} parent=1 // pred_region
      _
    $region9: #{pgraph_conv_forward.1} parent=1 // pred_fallthru
      _
    // Predicated region
    $region10: #{pgraph_conv_forward.1} parent=1 // pred_check
      _
    $region11: #{pgraph_conv_forward.1} parent=1 // pred_check_branch
      %15 = sbr.rel (0) target = $region13
    $region12: #{pgraph_conv_forward.1} parent=1 // pred_region
      %17 = vsyncadd [#allocation3], 0
      %s18 = sshll.u32 %s2, 4
      %s19 = int_to_ptr.hbm [resolvable:$true] %s18
      %s20 = sshll.u32 [#allocation2], 4
      %s21 = int_to_ptr.vmem [resolvable:$true] %s20
      %26 = dma.hbm_to_vmem [thread:$0]  %s19, 16384, %s21, [#allocation3], 256, 256, 16
    $region13: #{pgraph_conv_forward.1} parent=1 // pred_fallthru
      _
    // Predicated region
    $region14: #{pgraph_conv_forward.1} parent=1 // pred_check
      _
    $region15: #{pgraph_conv_forward.1} parent=1 // pred_check_branch
      %28 = sbr.rel (0) target = $region17
    $region16: #{pgraph_conv_forward.1} parent=1 // pred_region
      _
    $region17: #{pgraph_conv_forward.1} parent=1 // pred_fallthru
      _
    // Predicated region
    $region18: #{pgraph_conv_forward.1} parent=1 // pred_check
      _
    $region19: #{pgraph_conv_forward.1} parent=1 // pred_check_branch
      %30 = sbr.rel (0) target = $region21
    $region20: #{pgraph_conv_forward.1} parent=1 // pred_region
      %32 = dma.done [#allocation3], 16384
    $region21: #{pgraph_conv_forward.1} parent=1 // pred_fallthru
      _
    %v33 = vld [vmem:[%s0] sm:$0xff]
    %v34 = vld [vmem:[%s0 + $0x8] sm:$0xff]
    %v35 = vld [vmem:[%s0 + $0x10] sm:$0xff]
    %v36 = vld [vmem:[%s0 + $0x18] sm:$0xff]
    %v37 = vld [vmem:[%s1] sm:$0xff]
    %v38 = vld [vmem:[%s1 + $0x8] sm:$0xff]
    %v39 = vld [vmem:[%s1 + $0x10] sm:$0xff]
    %v40 = vld [vmem:[%s1 + $0x18] sm:$0xff]
    %v41 = vld [vmem:[#allocation2] sm:$0xff]
    %v42 = vld [vmem:[#allocation2 + $0x8] sm:$0xff]
    %v43 = vld [vmem:[#allocation2 + $0x10] sm:$0xff]
    %v44 = vld [vmem:[#allocation2 + $0x18] sm:$0xff]
    %v45 = vld [vmem:[#allocation2 + $0x20] sm:$0xff]
    %v46 = vld [vmem:[#allocation2 + $0x28] sm:$0xff]
    %v47 = vld [vmem:[#allocation2 + $0x30] sm:$0xff]
    %v48 = vld [vmem:[#allocation2 + $0x38] sm:$0xff]
    %v49 = vld [vmem:[#allocation2 + $0x40] sm:$0xff]
    %v50 = vld [vmem:[#allocation2 + $0x48] sm:$0xff]
    %v51 = vld [vmem:[#allocation2 + $0x50] sm:$0xff]
    %v52 = vld [vmem:[#allocation2 + $0x58] sm:$0xff]
    %v53 = vld [vmem:[#allocation2 + $0x60] sm:$0xff]
    %v54 = vld [vmem:[#allocation2 + $0x68] sm:$0xff]
    %v55 = vld [vmem:[#allocation2 + $0x70] sm:$0xff]
    %v56 = vld [vmem:[#allocation2 + $0x78] sm:$0xff]
    %v57 = vld [vmem:[#allocation2 + $0x80] sm:$0xff]
    %v58 = vld [vmem:[#allocation2 + $0x88] sm:$0xff]
    %v59 = vld [vmem:[#allocation2 + $0x90] sm:$0xff]
    %v60 = vld [vmem:[#allocation2 + $0x98] sm:$0xff]
    %v61 = vld [vmem:[#allocation2 + $0xa0] sm:$0xff]
    %v62 = vld [vmem:[#allocation2 + $0xa8] sm:$0xff]
    %v63 = vld [vmem:[#allocation2 + $0xb0] sm:$0xff]
    %v64 = vld [vmem:[#allocation2 + $0xb8] sm:$0xff]
    %v65 = vld [vmem:[#allocation2 + $0xc0] sm:$0xff]
    %v66 = vld [vmem:[#allocation2 + $0xc8] sm:$0xff]
    %v67 = vld [vmem:[#allocation2 + $0xd0] sm:$0xff]
    %v68 = vld [vmem:[#allocation2 + $0xd8] sm:$0xff]
    %v69 = vld [vmem:[#allocation2 + $0xe0] sm:$0xff]
    %v70 = vld [vmem:[#allocation2 + $0xe8] sm:$0xff]
    %v71 = vld [vmem:[#allocation2 + $0xf0] sm:$0xff]
    %v72 = vld [vmem:[#allocation2 + $0xf8] sm:$0xff]
    %73 = vmatpush.msra.mxu0 %v71
    %74 = vmatpush.msra.mxu0 %v69
    %75 = vmatpush.msra.mxu0 %v67
    %76 = vmatpush.msra.mxu0 %v65
    %77 = vmatpush.msra.mxu0 %v63
    %78 = vmatpush.msra.mxu0 %v61
    %79 = vmatpush.msra.mxu0 %v59
    %80 = vmatpush.msra.mxu0 %v57
    %81 = vmatpush.msra.mxu0 %v55
    %82 = vmatpush.msra.mxu0 %v53
    %83 = vmatpush.msra.mxu0 %v51
    %84 = vmatpush.msra.mxu0 %v49
    %85 = vmatpush.msra.mxu0 %v47
    %86 = vmatpush.msra.mxu0 %v45
    %87 = vmatpush.msra.mxu0 %v43
    %88 = vmatpush.msra.mxu0 %v41
    %89 = vmatmul.f32.gmra.mxu0 %v37
    %v90 = vpop.f32.mrf.mxu0
    %v91 = vadd.f32 0.0, %v90
    %92 = vmatmul.f32.gmra.mxu0 %v38
    %v93 = vpop.f32.mrf.mxu0
    %v94 = vadd.f32 0.0, %v93
    %95 = vmatmul.f32.gmra.mxu0 %v39
    %v96 = vpop.f32.mrf.mxu0
    %v97 = vadd.f32 0.0, %v96
    %98 = vmatmul.f32.gmra.mxu0 %v40
    %v99 = vpop.f32.mrf.mxu0
    %v100 = vadd.f32 0.0, %v99
    %101 = vdwg.mxu0
    %102 = vmatpush.msra.mxu0 %v72
    %103 = vmatpush.msra.mxu0 %v70
    %104 = vmatpush.msra.mxu0 %v68
    %105 = vmatpush.msra.mxu0 %v66
    %106 = vmatpush.msra.mxu0 %v64
    %107 = vmatpush.msra.mxu0 %v62
    %108 = vmatpush.msra.mxu0 %v60
    %109 = vmatpush.msra.mxu0 %v58
    %110 = vmatpush.msra.mxu0 %v56
    %111 = vmatpush.msra.mxu0 %v54
    %112 = vmatpush.msra.mxu0 %v52
    %113 = vmatpush.msra.mxu0 %v50
    %114 = vmatpush.msra.mxu0 %v48
    %115 = vmatpush.msra.mxu0 %v46
    %116 = vmatpush.msra.mxu0 %v44
    %117 = vmatpush.msra.mxu0 %v42
    %118 = vmatmul.f32.gmra.mxu0 %v37
    %v119 = vpop.f32.mrf.mxu0
    %v120 = vadd.f32 0.0, %v119
    %121 = vmatmul.f32.gmra.mxu0 %v38
    %v122 = vpop.f32.mrf.mxu0
    %v123 = vadd.f32 0.0, %v122
    %124 = vmatmul.f32.gmra.mxu0 %v39
    %v125 = vpop.f32.mrf.mxu0
    %v126 = vadd.f32 0.0, %v125
    %127 = vmatmul.f32.gmra.mxu0 %v40
    %v128 = vpop.f32.mrf.mxu0
    %v129 = vadd.f32 0.0, %v128
    %130 = vdwg.mxu0
    %vm131 = vcmask 261120
    %v133 = vsel %vm131, %v33, 0
    %v136 = vsel %vm131, %v34, 0
    %v139 = vsel %vm131, %v35, 0
    %v142 = vsel %vm131, %v36, 0
    %144 = vmatpush.msra.mxu0 0.0
    %145 = vmatpush.msra.mxu0 0.0
    %146 = vmatpush.msra.mxu0 0.0
    %147 = vmatpush.msra.mxu0 0.0
    %148 = vmatpush.msra.mxu0 0.0
    %149 = vmatpush.msra.mxu0 0.0
    %150 = vmatpush.msra.mxu0 0.0
    %151 = vmatpush.msra.mxu0 0.0
    %152 = vmatpush.msra.mxu0 0.0
    %153 = vmatpush.msra.mxu0 0.0
    %154 = vmatpush.msra.mxu0 0.0
    %155 = vmatpush.msra.mxu0 0.0
    %156 = vmatpush.msra.mxu0 %v100
    %157 = vmatpush.msra.mxu0 %v97
    %158 = vmatpush.msra.mxu0 %v94
    %159 = vmatpush.msra.mxu0 %v91
    %160 = vmatmul.f32.gmra.mxu0 %v133
    %v161 = vpop.f32.mrf.mxu0
    %v162 = vadd.f32 %v120, %v161
    %163 = vmatmul.f32.gmra.mxu0 %v136
    %v164 = vpop.f32.mrf.mxu0
    %v165 = vadd.f32 %v123, %v164
    %166 = vmatmul.f32.gmra.mxu0 %v139
    %v167 = vpop.f32.mrf.mxu0
    %v168 = vadd.f32 %v126, %v167
    %169 = vmatmul.f32.gmra.mxu0 %v142
    %v170 = vpop.f32.mrf.mxu0
    %v171 = vadd.f32 %v129, %v170
    %172 = vdwg.mxu0
    %v173 = vld [vmem:[%s3] sm:$0x1]
    %v175 = vperm.slane %v173, 0
    %v177 = vadd.f32 %v162, %v175
    %v178 = vadd.f32 %v165, %v175
    %v179 = vadd.f32 %v168, %v175
    %v180 = vadd.f32 %v171, %v175
    %v181 = vmax.f32 %v177, 0.0
    %v182 = vmax.f32 %v178, 0.0
    %v183 = vmax.f32 %v179, 0.0
    %v184 = vmax.f32 %v180, 0.0
    %s185 = scalar_lea.vmem [#allocation2], 256
    %v186 = vld [vmem:[%s185] sm:$0xff]
    %v187 = vld [vmem:[%s185 + $0x8] sm:$0xff]
    %v188 = vld [vmem:[%s185 + $0x10] sm:$0xff]
    %v189 = vld [vmem:[%s185 + $0x18] sm:$0xff]
    %v190 = vld [vmem:[%s185 + $0x20] sm:$0xff]
    %v191 = vld [vmem:[%s185 + $0x28] sm:$0xff]
    %v192 = vld [vmem:[%s185 + $0x30] sm:$0xff]
    %v193 = vld [vmem:[%s185 + $0x38] sm:$0xff]
    %v194 = vld [vmem:[%s185 + $0x40] sm:$0xff]
    %v195 = vld [vmem:[%s185 + $0x48] sm:$0xff]
    %v196 = vld [vmem:[%s185 + $0x50] sm:$0xff]
    %v197 = vld [vmem:[%s185 + $0x58] sm:$0xff]
    %v198 = vld [vmem:[%s185 + $0x60] sm:$0xff]
    %v199 = vld [vmem:[%s185 + $0x68] sm:$0xff]
    %v200 = vld [vmem:[%s185 + $0x70] sm:$0xff]
    %v201 = vld [vmem:[%s185 + $0x78] sm:$0xff]
    %v202 = vld [vmem:[%s185 + $0x80] sm:$0xff]
    %v203 = vld [vmem:[%s185 + $0x88] sm:$0xff]
    %v204 = vld [vmem:[%s185 + $0x90] sm:$0xff]
    %v205 = vld [vmem:[%s185 + $0x98] sm:$0xff]
    %v206 = vld [vmem:[%s185 + $0xa0] sm:$0xff]
    %v207 = vld [vmem:[%s185 + $0xa8] sm:$0xff]
    %v208 = vld [vmem:[%s185 + $0xb0] sm:$0xff]
    %v209 = vld [vmem:[%s185 + $0xb8] sm:$0xff]
    %v210 = vld [vmem:[%s185 + $0xc0] sm:$0xff]
    %v211 = vld [vmem:[%s185 + $0xc8] sm:$0xff]
    %v212 = vld [vmem:[%s185 + $0xd0] sm:$0xff]
    %v213 = vld [vmem:[%s185 + $0xd8] sm:$0xff]
    %v214 = vld [vmem:[%s185 + $0xe0] sm:$0xff]
    %v215 = vld [vmem:[%s185 + $0xe8] sm:$0xff]
    %v216 = vld [vmem:[%s185 + $0xf0] sm:$0xff]
    %v217 = vld [vmem:[%s185 + $0xf8] sm:$0xff]
    %218 = vmatpush.msra.mxu0 %v216
    %219 = vmatpush.msra.mxu0 %v214
    %220 = vmatpush.msra.mxu0 %v212
    %221 = vmatpush.msra.mxu0 %v210
    %222 = vmatpush.msra.mxu0 %v208
    %223 = vmatpush.msra.mxu0 %v206
    %224 = vmatpush.msra.mxu0 %v204
    %225 = vmatpush.msra.mxu0 %v202
    %226 = vmatpush.msra.mxu0 %v200
    %227 = vmatpush.msra.mxu0 %v198
    %228 = vmatpush.msra.mxu0 %v196
    %229 = vmatpush.msra.mxu0 %v194
    %230 = vmatpush.msra.mxu0 %v192
    %231 = vmatpush.msra.mxu0 %v190
    %232 = vmatpush.msra.mxu0 %v188
    %233 = vmatpush.msra.mxu0 %v186
    %234 = vmatmul.f32.gmra.mxu0 %v181
    %v235 = vpop.f32.mrf.mxu0
    %v236 = vadd.f32 0.0, %v235
    %237 = vmatmul.f32.gmra.mxu0 %v182
    %v238 = vpop.f32.mrf.mxu0
    %v239 = vadd.f32 0.0, %v238
    %240 = vmatmul.f32.gmra.mxu0 %v183
    %v241 = vpop.f32.mrf.mxu0
    %v242 = vadd.f32 0.0, %v241
    %243 = vmatmul.f32.gmra.mxu0 %v184
    %v244 = vpop.f32.mrf.mxu0
    %v245 = vadd.f32 0.0, %v244
    %246 = vdwg.mxu0
    %247 = vmatpush.msra.mxu0 %v217
    %248 = vmatpush.msra.mxu0 %v215
    %249 = vmatpush.msra.mxu0 %v213
    %250 = vmatpush.msra.mxu0 %v211
    %251 = vmatpush.msra.mxu0 %v209
    %252 = vmatpush.msra.mxu0 %v207
    %253 = vmatpush.msra.mxu0 %v205
    %254 = vmatpush.msra.mxu0 %v203
    %255 = vmatpush.msra.mxu0 %v201
    %256 = vmatpush.msra.mxu0 %v199
    %257 = vmatpush.msra.mxu0 %v197
    %258 = vmatpush.msra.mxu0 %v195
    %259 = vmatpush.msra.mxu0 %v193
    %260 = vmatpush.msra.mxu0 %v191
    %261 = vmatpush.msra.mxu0 %v189
    %262 = vmatpush.msra.mxu0 %v187
    %263 = vmatmul.f32.gmra.mxu0 %v181
    %v264 = vpop.f32.mrf.mxu0
    %v265 = vadd.f32 0.0, %v264
    %266 = vmatmul.f32.gmra.mxu0 %v182
    %v267 = vpop.f32.mrf.mxu0
    %v268 = vadd.f32 0.0, %v267
    %269 = vmatmul.f32.gmra.mxu0 %v183
    %v270 = vpop.f32.mrf.mxu0
    %v271 = vadd.f32 0.0, %v270
    %272 = vmatmul.f32.gmra.mxu0 %v184
    %v273 = vpop.f32.mrf.mxu0
    %v274 = vadd.f32 0.0, %v273
    %275 = vdwg.mxu0
    %276 = vmatpush.msra.mxu0 0.0
    %277 = vmatpush.msra.mxu0 0.0
    %278 = vmatpush.msra.mxu0 0.0
    %279 = vmatpush.msra.mxu0 0.0
    %280 = vmatpush.msra.mxu0 0.0
    %281 = vmatpush.msra.mxu0 0.0
    %282 = vmatpush.msra.mxu0 0.0
    %283 = vmatpush.msra.mxu0 0.0
    %284 = vmatpush.msra.mxu0 0.0
    %285 = vmatpush.msra.mxu0 0.0
    %286 = vmatpush.msra.mxu0 0.0
    %287 = vmatpush.msra.mxu0 0.0
    %288 = vmatpush.msra.mxu0 %v245
    %289 = vmatpush.msra.mxu0 %v242
    %290 = vmatpush.msra.mxu0 %v239
    %291 = vmatpush.msra.mxu0 %v236
    %292 = vmatmul.f32.gmra.mxu0 %v133
    %v293 = vpop.f32.mrf.mxu0
    %v294 = vadd.f32 %v265, %v293
    %295 = vmatmul.f32.gmra.mxu0 %v136
    %v296 = vpop.f32.mrf.mxu0
    %v297 = vadd.f32 %v268, %v296
    %298 = vmatmul.f32.gmra.mxu0 %v139
    %v299 = vpop.f32.mrf.mxu0
    %v300 = vadd.f32 %v271, %v299
    %301 = vmatmul.f32.gmra.mxu0 %v142
    %v302 = vpop.f32.mrf.mxu0
    %v303 = vadd.f32 %v274, %v302
    %304 = vdwg.mxu0
    %s305 = scalar_lea.vmem %s3, 1
    %v306 = vld [vmem:[%s305] sm:$0x1]
    %v308 = vperm.slane %v306, 0
    %v310 = vadd.f32 %v294, %v308
    %v311 = vadd.f32 %v297, %v308
    %v312 = vadd.f32 %v300, %v308
    %v313 = vadd.f32 %v303, %v308
    %v314 = vmax.f32 %v310, 0.0
    %v315 = vmax.f32 %v311, 0.0
    %v316 = vmax.f32 %v312, 0.0
    %v317 = vmax.f32 %v313, 0.0
    %s318 = scalar_lea.vmem [#allocation2], 512
    %v319 = vld [vmem:[%s318] sm:$0xff]
    %v320 = vld [vmem:[%s318 + $0x8] sm:$0xff]
    %v321 = vld [vmem:[%s318 + $0x10] sm:$0xff]
    %v322 = vld [vmem:[%s318 + $0x18] sm:$0xff]
    %v323 = vld [vmem:[%s318 + $0x20] sm:$0xff]
    %v324 = vld [vmem:[%s318 + $0x28] sm:$0xff]
    %v325 = vld [vmem:[%s318 + $0x30] sm:$0xff]
    %v326 = vld [vmem:[%s318 + $0x38] sm:$0xff]
    %v327 = vld [vmem:[%s318 + $0x40] sm:$0xff]
    %v328 = vld [vmem:[%s318 + $0x48] sm:$0xff]
    %v329 = vld [vmem:[%s318 + $0x50] sm:$0xff]
    %v330 = vld [vmem:[%s318 + $0x58] sm:$0xff]
    %v331 = vld [vmem:[%s318 + $0x60] sm:$0xff]
    %v332 = vld [vmem:[%s318 + $0x68] sm:$0xff]
    %v333 = vld [vmem:[%s318 + $0x70] sm:$0xff]
    %v334 = vld [vmem:[%s318 + $0x78] sm:$0xff]
    %v335 = vld [vmem:[%s318 + $0x80] sm:$0xff]
    %v336 = vld [vmem:[%s318 + $0x88] sm:$0xff]
    %v337 = vld [vmem:[%s318 + $0x90] sm:$0xff]
    %v338 = vld [vmem:[%s318 + $0x98] sm:$0xff]
    %v339 = vld [vmem:[%s318 + $0xa0] sm:$0xff]
    %v340 = vld [vmem:[%s318 + $0xa8] sm:$0xff]
    %v341 = vld [vmem:[%s318 + $0xb0] sm:$0xff]
    %v342 = vld [vmem:[%s318 + $0xb8] sm:$0xff]
    %v343 = vld [vmem:[%s318 + $0xc0] sm:$0xff]
    %v344 = vld [vmem:[%s318 + $0xc8] sm:$0xff]
    %v345 = vld [vmem:[%s318 + $0xd0] sm:$0xff]
    %v346 = vld [vmem:[%s318 + $0xd8] sm:$0xff]
    %v347 = vld [vmem:[%s318 + $0xe0] sm:$0xff]
    %v348 = vld [vmem:[%s318 + $0xe8] sm:$0xff]
    %v349 = vld [vmem:[%s318 + $0xf0] sm:$0xff]
    %v350 = vld [vmem:[%s318 + $0xf8] sm:$0xff]
    %351 = vmatpush.msra.mxu0 %v349
    %352 = vmatpush.msra.mxu0 %v347
    %353 = vmatpush.msra.mxu0 %v345
    %354 = vmatpush.msra.mxu0 %v343
    %355 = vmatpush.msra.mxu0 %v341
    %356 = vmatpush.msra.mxu0 %v339
    %357 = vmatpush.msra.mxu0 %v337
    %358 = vmatpush.msra.mxu0 %v335
    %359 = vmatpush.msra.mxu0 %v333
    %360 = vmatpush.msra.mxu0 %v331
    %361 = vmatpush.msra.mxu0 %v329
    %362 = vmatpush.msra.mxu0 %v327
    %363 = vmatpush.msra.mxu0 %v325
    %364 = vmatpush.msra.mxu0 %v323
    %365 = vmatpush.msra.mxu0 %v321
    %366 = vmatpush.msra.mxu0 %v319
    %367 = vmatmul.f32.gmra.mxu0 %v314
    %v368 = vpop.f32.mrf.mxu0
    %v369 = vadd.f32 0.0, %v368
    %370 = vmatmul.f32.gmra.mxu0 %v315
    %v371 = vpop.f32.mrf.mxu0
    %v372 = vadd.f32 0.0, %v371
    %373 = vmatmul.f32.gmra.mxu0 %v316
    %v374 = vpop.f32.mrf.mxu0
    %v375 = vadd.f32 0.0, %v374
    %376 = vmatmul.f32.gmra.mxu0 %v317
    %v377 = vpop.f32.mrf.mxu0
    %v378 = vadd.f32 0.0, %v377
    %379 = vdwg.mxu0
    %380 = vmatpush.msra.mxu0 %v350
    %381 = vmatpush.msra.mxu0 %v348
    %382 = vmatpush.msra.mxu0 %v346
    %383 = vmatpush.msra.mxu0 %v344
    %384 = vmatpush.msra.mxu0 %v342
    %385 = vmatpush.msra.mxu0 %v340
    %386 = vmatpush.msra.mxu0 %v338
    %387 = vmatpush.msra.mxu0 %v336
    %388 = vmatpush.msra.mxu0 %v334
    %389 = vmatpush.msra.mxu0 %v332
    %390 = vmatpush.msra.mxu0 %v330
    %391 = vmatpush.msra.mxu0 %v328
    %392 = vmatpush.msra.mxu0 %v326
    %393 = vmatpush.msra.mxu0 %v324
    %394 = vmatpush.msra.mxu0 %v322
    %395 = vmatpush.msra.mxu0 %v320
    %396 = vmatmul.f32.gmra.mxu0 %v314
    %v397 = vpop.f32.mrf.mxu0
    %v398 = vadd.f32 0.0, %v397
    %399 = vmatmul.f32.gmra.mxu0 %v315
    %v400 = vpop.f32.mrf.mxu0
    %v401 = vadd.f32 0.0, %v400
    %402 = vmatmul.f32.gmra.mxu0 %v316
    %v403 = vpop.f32.mrf.mxu0
    %v404 = vadd.f32 0.0, %v403
    %405 = vmatmul.f32.gmra.mxu0 %v317
    %v406 = vpop.f32.mrf.mxu0
    %v407 = vadd.f32 0.0, %v406
    %408 = vdwg.mxu0
    %409 = vmatpush.msra.mxu0 0.0
    %410 = vmatpush.msra.mxu0 0.0
    %411 = vmatpush.msra.mxu0 0.0
    %412 = vmatpush.msra.mxu0 0.0
    %413 = vmatpush.msra.mxu0 0.0
    %414 = vmatpush.msra.mxu0 0.0
    %415 = vmatpush.msra.mxu0 0.0
    %416 = vmatpush.msra.mxu0 0.0
    %417 = vmatpush.msra.mxu0 0.0
    %418 = vmatpush.msra.mxu0 0.0
    %419 = vmatpush.msra.mxu0 0.0
    %420 = vmatpush.msra.mxu0 0.0
    %421 = vmatpush.msra.mxu0 %v378
    %422 = vmatpush.msra.mxu0 %v375
    %423 = vmatpush.msra.mxu0 %v372
    %424 = vmatpush.msra.mxu0 %v369
    %425 = vmatmul.f32.gmra.mxu0 %v133
    %v426 = vpop.f32.mrf.mxu0
    %v427 = vadd.f32 %v398, %v426
    %428 = vmatmul.f32.gmra.mxu0 %v136
    %v429 = vpop.f32.mrf.mxu0
    %v430 = vadd.f32 %v401, %v429
    %431 = vmatmul.f32.gmra.mxu0 %v139
    %v432 = vpop.f32.mrf.mxu0
    %v433 = vadd.f32 %v404, %v432
    %434 = vmatmul.f32.gmra.mxu0 %v142
    %v435 = vpop.f32.mrf.mxu0
    %v436 = vadd.f32 %v407, %v435
    %437 = vdwg.mxu0
    %s438 = scalar_lea.vmem %s3, 2
    %v439 = vld [vmem:[%s438] sm:$0x1]
    %v441 = vperm.slane %v439, 0
    %v443 = vadd.f32 %v427, %v441
    %v444 = vadd.f32 %v430, %v441
    %v445 = vadd.f32 %v433, %v441
    %v446 = vadd.f32 %v436, %v441
    %v447 = vmax.f32 %v443, 0.0
    %v448 = vmax.f32 %v444, 0.0
    %v449 = vmax.f32 %v445, 0.0
    %v450 = vmax.f32 %v446, 0.0
    %s451 = scalar_lea.vmem [#allocation2], 768
    %v452 = vld [vmem:[%s451] sm:$0xff]
    %v453 = vld [vmem:[%s451 + $0x8] sm:$0xff]
    %v454 = vld [vmem:[%s451 + $0x10] sm:$0xff]
    %v455 = vld [vmem:[%s451 + $0x18] sm:$0xff]
    %v456 = vld [vmem:[%s451 + $0x20] sm:$0xff]
    %v457 = vld [vmem:[%s451 + $0x28] sm:$0xff]
    %v458 = vld [vmem:[%s451 + $0x30] sm:$0xff]
    %v459 = vld [vmem:[%s451 + $0x38] sm:$0xff]
    %v460 = vld [vmem:[%s451 + $0x40] sm:$0xff]
    %v461 = vld [vmem:[%s451 + $0x48] sm:$0xff]
    %v462 = vld [vmem:[%s451 + $0x50] sm:$0xff]
    %v463 = vld [vmem:[%s451 + $0x58] sm:$0xff]
    %v464 = vld [vmem:[%s451 + $0x60] sm:$0xff]
    %v465 = vld [vmem:[%s451 + $0x68] sm:$0xff]
    %v466 = vld [vmem:[%s451 + $0x70] sm:$0xff]
    %v467 = vld [vmem:[%s451 + $0x78] sm:$0xff]
    %v468 = vld [vmem:[%s451 + $0x80] sm:$0xff]
    %v469 = vld [vmem:[%s451 + $0x88] sm:$0xff]
    %v470 = vld [vmem:[%s451 + $0x90] sm:$0xff]
    %v471 = vld [vmem:[%s451 + $0x98] sm:$0xff]
    %v472 = vld [vmem:[%s451 + $0xa0] sm:$0xff]
    %v473 = vld [vmem:[%s451 + $0xa8] sm:$0xff]
    %v474 = vld [vmem:[%s451 + $0xb0] sm:$0xff]
    %v475 = vld [vmem:[%s451 + $0xb8] sm:$0xff]
    %v476 = vld [vmem:[%s451 + $0xc0] sm:$0xff]
    %v477 = vld [vmem:[%s451 + $0xc8] sm:$0xff]
    %v478 = vld [vmem:[%s451 + $0xd0] sm:$0xff]
    %v479 = vld [vmem:[%s451 + $0xd8] sm:$0xff]
    %v480 = vld [vmem:[%s451 + $0xe0] sm:$0xff]
    %v481 = vld [vmem:[%s451 + $0xe8] sm:$0xff]
    %v482 = vld [vmem:[%s451 + $0xf0] sm:$0xff]
    %v483 = vld [vmem:[%s451 + $0xf8] sm:$0xff]
    %484 = vmatpush.msra.mxu0 %v482
    %485 = vmatpush.msra.mxu0 %v480
    %486 = vmatpush.msra.mxu0 %v478
    %487 = vmatpush.msra.mxu0 %v476
    %488 = vmatpush.msra.mxu0 %v474
    %489 = vmatpush.msra.mxu0 %v472
    %490 = vmatpush.msra.mxu0 %v470
    %491 = vmatpush.msra.mxu0 %v468
    %492 = vmatpush.msra.mxu0 %v466
    %493 = vmatpush.msra.mxu0 %v464
    %494 = vmatpush.msra.mxu0 %v462
    %495 = vmatpush.msra.mxu0 %v460
    %496 = vmatpush.msra.mxu0 %v458
    %497 = vmatpush.msra.mxu0 %v456
    %498 = vmatpush.msra.mxu0 %v454
    %499 = vmatpush.msra.mxu0 %v452
    %500 = vmatmul.f32.gmra.mxu0 %v447
    %v501 = vpop.f32.mrf.mxu0
    %v502 = vadd.f32 0.0, %v501
    %503 = vmatmul.f32.gmra.mxu0 %v448
    %v504 = vpop.f32.mrf.mxu0
    %v505 = vadd.f32 0.0, %v504
    %506 = vmatmul.f32.gmra.mxu0 %v449
    %v507 = vpop.f32.mrf.mxu0
    %v508 = vadd.f32 0.0, %v507
    %509 = vmatmul.f32.gmra.mxu0 %v450
    %v510 = vpop.f32.mrf.mxu0
    %v511 = vadd.f32 0.0, %v510
    %512 = vdwg.mxu0
    %513 = vmatpush.msra.mxu0 %v483
    %514 = vmatpush.msra.mxu0 %v481
    %515 = vmatpush.msra.mxu0 %v479
    %516 = vmatpush.msra.mxu0 %v477
    %517 = vmatpush.msra.mxu0 %v475
    %518 = vmatpush.msra.mxu0 %v473
    %519 = vmatpush.msra.mxu0 %v471
    %520 = vmatpush.msra.mxu0 %v469
    %521 = vmatpush.msra.mxu0 %v467
    %522 = vmatpush.msra.mxu0 %v465
    %523 = vmatpush.msra.mxu0 %v463
    %524 = vmatpush.msra.mxu0 %v461
    %525 = vmatpush.msra.mxu0 %v459
    %526 = vmatpush.msra.mxu0 %v457
    %527 = vmatpush.msra.mxu0 %v455
    %528 = vmatpush.msra.mxu0 %v453
    %529 = vmatmul.f32.gmra.mxu0 %v447
    %v530 = vpop.f32.mrf.mxu0
    %v531 = vadd.f32 0.0, %v530
    %532 = vmatmul.f32.gmra.mxu0 %v448
    %v533 = vpop.f32.mrf.mxu0
    %v534 = vadd.f32 0.0, %v533
    %535 = vmatmul.f32.gmra.mxu0 %v449
    %v536 = vpop.f32.mrf.mxu0
    %v537 = vadd.f32 0.0, %v536
    %538 = vmatmul.f32.gmra.mxu0 %v450
    %v539 = vpop.f32.mrf.mxu0
    %v540 = vadd.f32 0.0, %v539
    %541 = vdwg.mxu0
    %542 = vmatpush.msra.mxu0 0.0
    %543 = vmatpush.msra.mxu0 0.0
    %544 = vmatpush.msra.mxu0 0.0
    %545 = vmatpush.msra.mxu0 0.0
    %546 = vmatpush.msra.mxu0 0.0
    %547 = vmatpush.msra.mxu0 0.0
    %548 = vmatpush.msra.mxu0 0.0
    %549 = vmatpush.msra.mxu0 0.0
    %550 = vmatpush.msra.mxu0 0.0
    %551 = vmatpush.msra.mxu0 0.0
    %552 = vmatpush.msra.mxu0 0.0
    %553 = vmatpush.msra.mxu0 0.0
    %554 = vmatpush.msra.mxu0 %v511
    %555 = vmatpush.msra.mxu0 %v508
    %556 = vmatpush.msra.mxu0 %v505
    %557 = vmatpush.msra.mxu0 %v502
    %558 = vmatmul.f32.gmra.mxu0 %v133
    %v559 = vpop.f32.mrf.mxu0
    %v560 = vadd.f32 %v531, %v559
    %561 = vmatmul.f32.gmra.mxu0 %v136
    %v562 = vpop.f32.mrf.mxu0
    %v563 = vadd.f32 %v534, %v562
    %564 = vmatmul.f32.gmra.mxu0 %v139
    %v565 = vpop.f32.mrf.mxu0
    %v566 = vadd.f32 %v537, %v565
    %567 = vmatmul.f32.gmra.mxu0 %v142
    %v568 = vpop.f32.mrf.mxu0
    %v569 = vadd.f32 %v540, %v568
    %570 = vdwg.mxu0
    %s571 = scalar_lea.vmem %s3, 3
    %v572 = vld [vmem:[%s571] sm:$0x1]
    %v574 = vperm.slane %v572, 0
    %v576 = vadd.f32 %v560, %v574
    %v577 = vadd.f32 %v563, %v574
    %v578 = vadd.f32 %v566, %v574
    %v579 = vadd.f32 %v569, %v574
    %v580 = vtanh.pop %v576
    %v581 = vtanh.pop %v577
    %v582 = vtanh.pop %v578
    %v583 = vtanh.pop %v579
    %584 = vst [vmem:[%s4] sm:$0xff] %v580
    %585 = vst [vmem:[%s4 + $0x8] sm:$0xff] %v581
    %586 = vst [vmem:[%s4 + $0x10] sm:$0xff] %v582
    %587 = vst [vmem:[%s4 + $0x18] sm:$0xff] %v583
    // Predicated region
    $region22: #{pgraph_conv_forward.1} parent=1 // pred_check
      _
    $region23: #{pgraph_conv_forward.1} parent=1 // pred_check_branch
      %589 = sbr.rel (0) target = $region25
    $region24: #{pgraph_conv_forward.1} parent=1 // pred_region
      _
    $region25: #{pgraph_conv_forward.1} parent=1 // pred_fallthru
      _
    // Predicated region
    $region26: #{pgraph_conv_forward.1} parent=1 // pred_check
      _
    $region27: #{pgraph_conv_forward.1} parent=1 // pred_check_branch
      %591 = sbr.rel (0) target = $region29
    $region28: #{pgraph_conv_forward.1} parent=1 // pred_region
      _
    $region29: #{pgraph_conv_forward.1} parent=1 // pred_fallthru
      _
    %592 = vsyncpa [#allocation3], 1

</llo_original>
